<compile_context>
chip_gen: v6e
topology: v6e:2x2x1
jax: 0.10.0
libtpu: 0.0.40
codegen_flags: <defaults>
</compile_context>

<pallas_src>
import jax
import jax.numpy as jnp
from jax.experimental import pallas as pl
from jax.experimental.pallas import tpu as pltpu

_LANES = 128


def _h_sigmoid_kernel(x_ref, o_ref):
    x = x_ref[...]
    # relu6(x + 3) / 6  ==  clamp(x + 3, 0, 6) / 6
    y = jnp.minimum(jnp.maximum(x + 3.0, 0.0), 6.0) / 6.0
    o_ref[...] = y.astype(o_ref.dtype)


def _sublane_multiple(dtype):
    # Packed-dtype sublane alignment: 8 rows for 32-bit, 16 for 16-bit, 32 for 8-bit.
    itemsize = jnp.dtype(dtype).itemsize
    return max(8, 32 // itemsize)


def _round_up(a, b):
    return ((a + b - 1) // b) * b


def h_sigmoid_pallas(x, *, target_block_bytes=2 << 20,
                     single_block_bytes=256 << 10, donate_input=False):
    """Elementwise hard-sigmoid relu6(x+3)/6. Any shape / float dtype."""
    orig_shape = x.shape
    dtype = x.dtype
    itemsize = jnp.dtype(dtype).itemsize
    sub = _sublane_multiple(dtype)

    flat = x.reshape(-1)
    n = flat.shape[0]

    # Lane-align: pad only when strictly necessary (rare); pad and tail-slice
    # stay paired so the h_sigmoid(0)=0.5 pad values are always discarded.
    rows = pl.cdiv(n, _LANES)
    padded_n = rows * _LANES
    padded = padded_n != n
    if padded:
        flat = jnp.pad(flat, (0, padded_n - n))
    x2d = flat.reshape(rows, _LANES)

    total_bytes = padded_n * itemsize
    if total_bytes <= single_block_bytes:
        # Small input: one grid step, block == full array (always layout-legal).
        blk_rows = rows
    else:
        # Tiled path: ~2 MiB lane-dense blocks, but never fewer than 4 steps so
        # DMA/compute overlap and v7x's 2 TensorCores both get >= 2 steps.
        blk_rows = max(sub, target_block_bytes // (_LANES * itemsize))
        min_steps = 4
        if pl.cdiv(rows, blk_rows) < min_steps:
            blk_rows = max(sub, _round_up(pl.cdiv(rows, min_steps), sub))
    grid = (pl.cdiv(rows, blk_rows),)

    call_kwargs = {}
    if donate_input and not padded:
        # Mirrors PyTorch inplace=True: output may reuse the input HBM buffer.
        call_kwargs["input_output_aliases"] = {0: 0}

    out2d = pl.pallas_call(
        _h_sigmoid_kernel,
        out_shape=jax.ShapeDtypeStruct((rows, _LANES), dtype),
        grid_spec=pltpu.PrefetchScalarGridSpec(
            num_scalar_prefetch=0,
            grid=grid,
            in_specs=[pl.BlockSpec((blk_rows, _LANES), lambda i: (i, 0))],
            out_specs=pl.BlockSpec((blk_rows, _LANES), lambda i: (i, 0)),
        ),
        compiler_params=pltpu.CompilerParams(
            dimension_semantics=("parallel",)),
        **call_kwargs,
    )(x2d)

    if padded:
        return out2d.reshape(-1)[:n].reshape(orig_shape)
    return out2d.reshape(orig_shape)


def h_sigmoid_ref(x):
    """Pure-JAX reference mirroring the PyTorch forward: relu6(x + 3) / 6."""
    return jnp.clip(x + 3.0, 0.0, 6.0) / 6.0


def _check(x, atol):
    out = jax.block_until_ready(h_sigmoid_pallas(x))
    ref = h_sigmoid_ref(x)
    assert out.shape == x.shape and out.dtype == x.dtype
    err = float(jnp.max(jnp.abs(out.astype(jnp.float32) - ref.astype(jnp.float32))))
    assert err <= atol, err


if __name__ == "__main__":
    key = jax.random.PRNGKey(0)
    k0, k1, k2, k3 = jax.random.split(key, 4)

    # Primary case: small NCHW feature map (single-block fast path, no pad).
    x0 = jax.random.uniform(k0, (2, 4, 16, 16), dtype=jnp.float32,
                            minval=-4.0, maxval=4.0)
    _check(x0, atol=0.0)

    # Tiled path (>= 4 grid steps), still lane-aligned so no pad/slice copies.
    x1 = jax.random.uniform(k1, (2, 32, 56, 56), dtype=jnp.float32,
                            minval=-4.0, maxval=4.0)
    _check(x1, atol=0.0)

    # Non-lane-aligned shape: exercises the (rare) pad + tail-slice path.
    x2 = jax.random.uniform(k2, (3, 5, 7, 11), dtype=jnp.float32,
                            minval=-4.0, maxval=4.0)
    _check(x2, atol=0.0)

    # bf16 input: exercises the 16-row sublane alignment path.
    x3 = jax.random.uniform(k3, (2, 16, 32, 32), dtype=jnp.float32,
                            minval=-4.0, maxval=4.0).astype(jnp.bfloat16)
    _check(x3, atol=1e-2)

    print("KERNEL_OK")
</pallas_src>

<mosaic_0001>
module attributes {stable_mosaic.version = 11 : i64} {
  func.func @_h_sigmoid_kernel(%arg0: i32, %arg1: memref<16x128xf32, #tpu.memory_space<vmem>>, %arg2: memref<16x128xf32, #tpu.memory_space<vmem>>) attributes {dimension_semantics = [#tpu.dimension_semantics<parallel>], iteration_bounds = array<i64: 1>, scalar_prefetch = 0 : i64, scratch_operands = 0 : i64, tpu.core_type = #tpu.core_type<tc>, window_params = [{transform_indices = @transform_0, window_bounds = array<i64: 16, 128>}, {transform_indices = @transform_1, window_bounds = array<i64: 16, 128>}]} {
    %c0 = arith.constant 0 : index
    %c0_0 = arith.constant 0 : index
    %0 = vector.load %arg1[%c0, %c0_0] : memref<16x128xf32, #tpu.memory_space<vmem>>, vector<16x128xf32>
    %cst = arith.constant 3.000000e+00 : f32
    %1 = vector.broadcast %cst : f32 to vector<16x128xf32>
    %2 = arith.addf %0, %1 : vector<16x128xf32>
    %cst_1 = arith.constant 0.000000e+00 : f32
    %3 = vector.broadcast %cst_1 : f32 to vector<16x128xf32>
    %4 = arith.maximumf %2, %3 : vector<16x128xf32>
    %cst_2 = arith.constant 6.000000e+00 : f32
    %5 = vector.broadcast %cst_2 : f32 to vector<16x128xf32>
    %6 = arith.minimumf %4, %5 : vector<16x128xf32>
    %cst_3 = arith.constant 6.000000e+00 : f32
    %7 = vector.broadcast %cst_3 : f32 to vector<16x128xf32>
    %8 = arith.divf %6, %7 : vector<16x128xf32>
    %c0_4 = arith.constant 0 : index
    %c0_5 = arith.constant 0 : index
    %9 = vector.load %arg2[%c0_4, %c0_5] : memref<16x128xf32, #tpu.memory_space<vmem>>, vector<16x128xf32>
    tpu.vector_store %arg2[%c0_4, %c0_5], %8 {strides = array<i32>} : memref<16x128xf32, #tpu.memory_space<vmem>>, vector<16x128xf32>,
    return
  }
  func.func @transform_0(%arg0: i32) -> (i32, i32) {
    %c0_i32 = arith.constant 0 : i32
    %c0_i32_0 = arith.constant 0 : i32
    return %arg0, %c0_i32 : i32, i32
  }
  func.func @transform_1(%arg0: i32) -> (i32, i32) {
    %c0_i32 = arith.constant 0 : i32
    %c0_i32_0 = arith.constant 0 : i32
    return %arg0, %c0_i32 : i32, i32
  }
}

</mosaic_0001>

<llo_original>
// kernel: tpu_custom_call.1
$region0: #{tpu_custom_call.1}
  #allocation0 [shape = 'u32[]', space=smem, size = 0x4, offset = 0x4, fixed_abs, tag = 'smem constant byte address 0x4 - core index']
  #allocation1 [shape = 'u32[144,128]{1,0:T(1,128)}', space=vmem, size = 0x12000, scoped, tag = 'internal scratch']
  %s0 = inlined_call_operand.hbm [shape: f32[16,128], index: 0, kind: input, shape index: {}]
  %s1 = inlined_call_operand.hbm [shape: f32[16,128], index: 1, kind: output, shape index: {}]
  %s2 = sld [smem:[#allocation0]]
  $region18: #{tpu_custom_call.1} parent=0
    _
  %s4 = ssub.s32 1, %s2
  %s5 = scalar_select 0, %s4, %s2
  $region1: #{tpu_custom_call.1} parent=0
    #allocation2 [shape = 'u8[8192]{0}', space=vmem, size = 0x2000, scoped, tag = 'input window, operand 0, single buffered']
    #allocation3 [shape = 's32[1]{0}', space=sflag, size = 0x4, scoped, tag = 'scoped memory for tpu_custom_call.1']
    #allocation4 [shape = 's32[1]{0}', space=sflag, size = 0x4, scoped, tag = 'scoped memory for tpu_custom_call.1']
    #allocation5 [shape = 'u8[8192]{0}', space=vmem, size = 0x2000, scoped, tag = 'output window, operand 0, single buffered']
    %6 = vsyncpa [#allocation3], 0
    %7 = vsyncpa [#allocation4], 0
    // Predicated region
    $region2: #{tpu_custom_call.1} parent=1 // pred_check
      _
    $region3: #{tpu_custom_call.1} parent=1 // pred_check_branch
      %9 = sbr.rel (0) target = $region5
    $region4: #{tpu_custom_call.1} parent=1 // pred_region
      %s11 = ssub.s32 256, 256
      %12 = vsyncadd [#allocation3], %s11
      %s13 = sshll.u32 [#allocation2], 4
      %s14 = int_to_ptr.vmem [resolvable:$true] %s13
      %19 = dma.hbm_to_vmem [thread:$0]  %s0, 256, %s14, [#allocation3], 128, 128, 8
    $region5: #{tpu_custom_call.1} parent=1 // pred_fallthru
      _
    // Predicated region
    $region6: #{tpu_custom_call.1} parent=1 // pred_check
      _
    $region7: #{tpu_custom_call.1} parent=1 // pred_check_branch
      %21 = sbr.rel (0) target = $region9
    $region8: #{tpu_custom_call.1} parent=1 // pred_region
      %22 = dma.done [#allocation3], 256
    $region9: #{tpu_custom_call.1} parent=1 // pred_fallthru
      _
    %v23 = vld [vmem:[#allocation2] sm:$0xff]
    %v24 = vld [vmem:[#allocation2 + $0x8] sm:$0xff]
    %v25 = vadd.f32 %v23, 3.0
    %v26 = vadd.f32 %v24, 3.0
    %v27 = vmax.f32 %v25, 0.0
    %v28 = vmax.f32 %v26, 0.0
    %v29 = vmin.f32 %v27, 6.0
    %v30 = vmin.f32 %v28, 6.0
    %v31 = vrcp.pop 6.0
    %v32 = vmul.f32 %v29, %v31
    %v33 = vmul.f32 %v30, %v31
    %34 = vst [vmem:[#allocation5] sm:$0xff] %v32
    %35 = vst [vmem:[#allocation5 + $0x8] sm:$0xff] %v33
    // Predicated region
    $region10: #{tpu_custom_call.1} parent=1 // pred_check
      _
    $region11: #{tpu_custom_call.1} parent=1 // pred_check_branch
      %37 = sbr.rel (0) target = $region13
    $region12: #{tpu_custom_call.1} parent=1 // pred_region
      %s39 = ssub.s32 256, 256
      %40 = vsyncadd [#allocation4], %s39
      %s41 = sshll.u32 [#allocation5], 4
      %s42 = int_to_ptr.vmem [resolvable:$true] %s41
      %47 = dma.vmem_to_hbm [thread:$0]  %s42, 256, %s1, [#allocation4], 128, 128, 8
    $region13: #{tpu_custom_call.1} parent=1 // pred_fallthru
      _
    // Predicated region
    $region14: #{tpu_custom_call.1} parent=1 // pred_check
      _
    $region15: #{tpu_custom_call.1} parent=1 // pred_check_branch
      %49 = sbr.rel (0) target = $region17
    $region16: #{tpu_custom_call.1} parent=1 // pred_region
      %50 = dma.done [#allocation4], 256
    $region17: #{tpu_custom_call.1} parent=1 // pred_fallthru
      _
    %51 = vsyncpa [#allocation3], 1
    %52 = vsyncpa [#allocation4], 1

</llo_original>
